<compile_context>
chip_gen: v6e
topology: v6e:2x2x1
jax: 0.10.0
libtpu: 0.0.40
codegen_flags: <defaults>
</compile_context>

<pallas_src>
import jax
import jax.numpy as jnp
from jax import lax
from jax.experimental import pallas as pl
from jax.experimental.pallas import tpu as pltpu


# ---------------------------------------------------------------------------
# Hardware / sizing helpers.
# ---------------------------------------------------------------------------

def _vmem_capacity_bytes():
    """Physical VMEM of the local chip; conservative 64 MiB (v7x) fallback."""
    try:
        info = pltpu.get_tpu_info()
        for name in ("vmem_capacity_bytes", "vmem_size_bytes", "vmem_bytes"):
            v = getattr(info, name, None)
            if v:
                return int(v)
    except Exception:
        pass
    return 64 * 1024 * 1024


def _round8(v):
    return max(8, (v // 8) * 8)


def _padded_bytes(shape, dtype):
    """VMEM footprint of one block: last two dims padded to the native tile."""
    itemsize = jnp.dtype(dtype).itemsize
    dims = [int(d) for d in shape]
    if len(dims) < 2:
        n = 1
        for d in dims:
            n *= d
        return max(n, 1) * itemsize
    *lead, r, c = dims
    sub = max(8, 32 // itemsize)          # 8 rows (f32) / 16 (bf16) / 32 (int8)
    rp = -(-r // sub) * sub
    cp = -(-c // 128) * 128
    n = rp * cp
    for d in lead:
        n *= d
    return n * itemsize


# ---------------------------------------------------------------------------
# Per-example conv2d (groups = batch): in-kernel tap formation (main path).
# ---------------------------------------------------------------------------

def _tap_footprint(tco, S2, Cin, Mp, KH, KW, nw, mm_dtype, out_dtype):
    return (2 * _padded_bytes((S2, Cin, Mp), mm_dtype)        # phase images (2 bufs)
            + 2 * _padded_bytes((KH * KW, tco, Cin), mm_dtype)
            + 2 * _padded_bytes((tco, 1), jnp.float32)
            + 2 * _padded_bytes((tco, nw), out_dtype)         # output (2 bufs)
            + 2 * _padded_bytes((tco, nw), jnp.float32)       # f32 acc + partial
            + 2 * _padded_bytes((Cin, nw), mm_dtype))         # tap window value


def _pick_tap_tco(B, Cout, S2, Cin, Mp, KH, KW, nw, mm_dtype, out_dtype, budget):
    tco = Cout if Cout <= 256 else 256
    while (_tap_footprint(tco, S2, Cin, Mp, KH, KW, nw, mm_dtype, out_dtype) > budget
           and tco > 8):
        cand = _round8(tco // 2)
        if cand >= tco:
            break
        tco = cand
    # v7x has 2 TensorCores sharded over parallel grid axes: keep >= 2 steps.
    if B * pl.cdiv(Cout, tco) < 2 and Cout >= 16:
        tco = min(tco, _round8(Cout // 2))
    fits = _tap_footprint(tco, S2, Cin, Mp, KH, KW, nw, mm_dtype, out_dtype) <= budget
    return tco, fits


def _build_phases(x_pad, stride, mm_dtype):
    """(B,Cin,Hp,Wp) padded input -> (B, s*s, Cin, (Hpp+1)*Wpp) flattened phases.

    Phase (rh, rw) holds x_pad[:, :, rh::s, rw::s]; every conv tap (kh, kw) is
    then a *contiguous* slice of the flattened phase image (plus one guard row
    of zeros so the last tap's slice stays in bounds).  ~1x input HBM traffic.
    """
    B, Cin, Hp, Wp = x_pad.shape
    Hpp = -(-Hp // stride)
    Wpp = -(-Wp // stride)
    faces = []
    for rh in range(stride):
        for rw in range(stride):
            ph = x_pad[:, :, rh::stride, rw::stride]
            ph = jnp.pad(ph, ((0, 0), (0, 0),
                              (0, Hpp + 1 - ph.shape[2]),
                              (0, Wpp - ph.shape[3])))
            faces.append(ph)
    xp = jnp.stack(faces, axis=1)
    xp = xp.reshape(B, stride * stride, Cin, (Hpp + 1) * Wpp).astype(mm_dtype)
    return xp, Hpp, Wpp


def _make_tap_kernel(KH, KW, stride, Cin, HO, Wpp, tco, nw):
    def kernel(w_ref, x_ref, b_ref, o_ref):
        # w_ref: (1, KH*KW, tco, Cin)   per-example filters, tap-major
        # x_ref: (1, s*s, Cin, Mp)      flattened zero-padded phase images
        # b_ref: (1, tco, 1)            f32 bias
        # o_ref: (1, tco, nw)           "wide" output (nw = HO*Wpp, lane-dense)
        acc = jnp.zeros((tco, nw), jnp.float32)
        for kh in range(KH):                       # unrolled: KH*KW MXU matmuls
            for kw in range(KW):
                t = kh * KW + kw
                pi = (kh % stride) * stride + (kw % stride)
                start = (kh // stride) * Wpp + (kw // stride)
                win = x_ref[0, pi, :, pl.ds(start, nw)]       # (Cin, nw)
                acc = acc + jnp.dot(w_ref[0, t], win,
                                    preferred_element_type=jnp.float32)
        o_ref[0] = (acc + b_ref[0]).astype(o_ref.dtype)
    return kernel


def _conv_taps(x, w, b, p, s, mm_dtype, out_dtype, tco, cap):
    B, Cin, H, W = x.shape
    _, Cout, _, KH, KW = w.shape
    HO = (H + 2 * p - KH) // s + 1
    WO = (W + 2 * p - KW) // s + 1

    x_pad = jnp.pad(x, ((0, 0), (0, 0), (p, p), (p, p)))
    xp, Hpp, Wpp = _build_phases(x_pad, s, mm_dtype)
    S2 = s * s
    Mp = xp.shape[-1]
    nw = HO * Wpp

    # Tap-major filter layout so each tap is a dense (tco, Cin) slab.
    w_t = jnp.transpose(w, (0, 3, 4, 1, 2)).reshape(B, KH * KW, Cout, Cin)
    w_t = w_t.astype(mm_dtype)
    b_col = b.astype(jnp.float32).reshape(B, Cout, 1)

    n_co = pl.cdiv(Cout, tco)
    blk = _tap_footprint(tco, S2, Cin, Mp, KH, KW, nw, mm_dtype, out_dtype)
    vmem_limit = int(min(int(cap * 0.75), max(2 * blk + (4 << 20), 16 << 20)))

    out_wide = pl.pallas_call(
        _make_tap_kernel(KH, KW, s, Cin, HO, Wpp, tco, nw),
        out_shape=jax.ShapeDtypeStruct((B, Cout, nw), out_dtype),
        grid=(B, n_co),
        in_specs=[
            pl.BlockSpec((1, KH * KW, tco, Cin), lambda bi, co: (bi, 0, co, 0)),
            # x indexed only by b -> stays resident across the Cout-tile axis.
            pl.BlockSpec((1, S2, Cin, Mp), lambda bi, co: (bi, 0, 0, 0)),
            pl.BlockSpec((1, tco, 1), lambda bi, co: (bi, co, 0)),
        ],
        out_specs=pl.BlockSpec((1, tco, nw), lambda bi, co: (bi, co, 0)),
        compiler_params=pltpu.CompilerParams(
            dimension_semantics=("parallel", "parallel"),
            vmem_limit_bytes=vmem_limit),
        cost_estimate=pl.CostEstimate(
            flops=2 * B * Cout * Cin * KH * KW * HO * Wpp,
            transcendentals=0,
            bytes_accessed=(xp.size * jnp.dtype(mm_dtype).itemsize
                            + w_t.size * jnp.dtype(mm_dtype).itemsize
                            + b_col.size * 4
                            + B * Cout * nw * jnp.dtype(out_dtype).itemsize)),
    )(w_t, xp, b_col)

    # Drop the (Wpp - WO) garbage columns; the reshape is a free metadata op.
    return out_wide.reshape(B, Cout, HO, Wpp)[:, :, :, :WO]


# ---------------------------------------------------------------------------
# Fallback path: im2col + tiled matmul (only when the whole per-batch image /
# output does not fit a VMEM budget).
# ---------------------------------------------------------------------------

def _im2col_footprint(tco, tn, K, mm_dtype, out_dtype):
    return (2 * _padded_bytes((tco, K), mm_dtype)
            + 2 * _padded_bytes((K, tn), mm_dtype)
            + 2 * _padded_bytes((tco, 1), jnp.float32)
            + 2 * _padded_bytes((tco, tn), out_dtype)
            + _padded_bytes((tco, tn), jnp.float32))


def _pick_im2col_tiles(Cout, N, K, mm_dtype, out_dtype, budget):
    tco = Cout if Cout <= 256 else 256
    if N <= 512:
        tn = N
    else:
        tn = max(256, min(2048, (N // 256) * 256))
    while tn > 256 and _im2col_footprint(tco, tn, K, mm_dtype, out_dtype) > budget:
        tn = max(256, tn // 2)
    while _im2col_footprint(tco, tn, K, mm_dtype, out_dtype) > budget and tco > 8:
        cand = _round8(tco // 2)
        if cand >= tco:
            break
        tco = cand
    # TODO(synk): if still over budget (huge K), add a K-reduction grid axis
    # ("arbitrary" + VMEM f32 scratch accumulator + pl.when init/finalize).
    return tco, tn


def _batch_conv_mm_kernel(w_ref, p_ref, b_ref, o_ref):
    acc = jnp.dot(w_ref[0], p_ref[0], preferred_element_type=jnp.float32)
    o_ref[0] = (acc + b_ref[0]).astype(o_ref.dtype)


def _conv_im2col(x, w, b, p, s, mm_dtype, out_dtype, budget, cap):
    B, Cin, H, W = x.shape
    _, Cout, _, KH, KW = w.shape
    HO = (H + 2 * p - KH) // s + 1
    WO = (W + 2 * p - KW) // s + 1
    N = HO * WO
    K = Cin * KH * KW

    patches = lax.conv_general_dilated_patches(
        x.astype(mm_dtype), (KH, KW), (s, s), ((p, p), (p, p)),
        dimension_numbers=("NCHW", "OIHW", "NCHW"))
    patches = patches.reshape(B, K, N)
    w_flat = w.reshape(B, Cout, K).astype(mm_dtype)
    b_col = b.astype(jnp.float32).reshape(B, Cout, 1)

    tco, tn = _pick_im2col_tiles(Cout, N, K, mm_dtype, out_dtype, budget)
    blk = _im2col_footprint(tco, tn, K, mm_dtype, out_dtype)
    vmem_limit = int(min(int(cap * 0.75), max(2 * blk + (4 << 20), 16 << 20)))

    # Cout tiles innermost: the big patches tile (indexed by b, sp only) stays
    # resident; only the small W tile is re-fetched per Cout step.
    grid = (B, pl.cdiv(N, tn), pl.cdiv(Cout, tco))
    out_flat = pl.pallas_call(
        _batch_conv_mm_kernel,
        out_shape=jax.ShapeDtypeStruct((B, Cout, N), out_dtype),
        grid=grid,
        in_specs=[
            pl.BlockSpec((1, tco, K), lambda bi, sp, co: (bi, co, 0)),
            pl.BlockSpec((1, K, tn), lambda bi, sp, co: (bi, 0, sp)),
            pl.BlockSpec((1, tco, 1), lambda bi, sp, co: (bi, co, 0)),
        ],
        out_specs=pl.BlockSpec((1, tco, tn), lambda bi, sp, co: (bi, co, sp)),
        compiler_params=pltpu.CompilerParams(
            dimension_semantics=("parallel", "parallel", "parallel"),
            vmem_limit_bytes=vmem_limit),
        cost_estimate=pl.CostEstimate(
            flops=2 * B * Cout * K * N, transcendentals=0,
            bytes_accessed=(w_flat.size * jnp.dtype(mm_dtype).itemsize
                            + patches.size * jnp.dtype(mm_dtype).itemsize
                            + b_col.size * 4
                            + B * Cout * N * jnp.dtype(out_dtype).itemsize)),
    )(w_flat, patches, b_col)
    return out_flat.reshape(B, Cout, HO, WO)


# ---------------------------------------------------------------------------
# Public per-example conv entry point.
# ---------------------------------------------------------------------------

def batch_conv_pallas(x, w, b, p=0, s=1, matmul_dtype=jnp.bfloat16,
                      out_dtype=None, force_path=None):
    """Per-batch-element conv2d: x:(B,Cin,H,W), w:(B,Cout,Cin,KH,KW), b:(B,Cout)."""
    B, Cin, H, W = x.shape
    _, Cout, _, KH, KW = w.shape
    mm_dtype = jnp.dtype(matmul_dtype)
    out_dtype = jnp.dtype(x.dtype if out_dtype is None else out_dtype)

    cap = _vmem_capacity_bytes()
    budget = int(cap * 0.45)

    HO = (H + 2 * p - KH) // s + 1
    WO = (W + 2 * p - KW) // s + 1
    Hp, Wp = H + 2 * p, W + 2 * p
    Hpp, Wpp = -(-Hp // s), -(-Wp // s)
    Mp = (Hpp + 1) * Wpp
    nw = HO * Wpp
    S2 = s * s

    tco, fits = _pick_tap_tco(B, Cout, S2, Cin, Mp, KH, KW, nw,
                              mm_dtype, out_dtype, budget)
    use_taps = force_path == "taps" or (force_path is None and fits)
    if use_taps:
        return _conv_taps(x, w, b, p, s, mm_dtype, out_dtype, tco, cap)
    # TODO(synk): halo-tiled streaming tap path for very large spatial extents;
    # until then, fall back to budget-tiled im2col + matmul.
    return _conv_im2col(x, w, b, p, s, mm_dtype, out_dtype, budget, cap)


# ---------------------------------------------------------------------------
# Soft addressing (keys @ address_space.T -> softmax -> @ bank), P-tiled.
# ---------------------------------------------------------------------------

def _soft_addressing_kernel(keys_ref, addr_t_ref, bank_ref, o_ref):
    # keys: (M, A), addr_t: (A, Nb), bank: (Nb, TP) -> o: (M, TP)
    logits = jnp.dot(keys_ref[...], addr_t_ref[...],
                     preferred_element_type=jnp.float32)
    logits = logits - jnp.max(logits, axis=-1, keepdims=True)
    e = jnp.exp(logits)
    sel = e / jnp.sum(e, axis=-1, keepdims=True)
    bank = bank_ref[...]
    o_ref[...] = jnp.dot(sel.astype(bank.dtype), bank,
                         preferred_element_type=jnp.float32).astype(o_ref.dtype)


def soft_addressing_pallas(keys, address_space, bank, out_dtype=None):
    lead = keys.shape[:-1]
    A = keys.shape[-1]
    Nb = bank.shape[0]
    flat_keys = keys.reshape(-1, A).astype(jnp.float32)
    M = flat_keys.shape[0]
    flat_bank = bank.reshape(Nb, -1)
    P = flat_bank.shape[1]
    out_dtype = jnp.dtype(bank.dtype if out_dtype is None else out_dtype)
    addr_t = address_space.astype(jnp.float32).T

    cap = _vmem_capacity_bytes()
    budget = int(cap * 0.25)
    if 2 * _padded_bytes((Nb, P), flat_bank.dtype) <= budget:
        tp = P                               # single lane-dense tile
    else:
        tp = 2048                            # stream the bank in 128-multiples
        while tp > 256 and 2 * _padded_bytes((Nb, tp), flat_bank.dtype) > budget:
            tp //= 2
    grid = (pl.cdiv(P, tp),)
    # TODO(synk): also tile the flattened key-row axis if it ever gets large.
    out = pl.pallas_call(
        _soft_addressing_kernel,
        out_shape=jax.ShapeDtypeStruct((M, P), out_dtype),
        grid=grid,
        in_specs=[
            pl.BlockSpec((M, A), lambda pi: (0, 0)),
            pl.BlockSpec((A, Nb), lambda pi: (0, 0)),
            pl.BlockSpec((Nb, tp), lambda pi: (0, pi)),
        ],
        out_specs=pl.BlockSpec((M, tp), lambda pi: (0, pi)),
        compiler_params=pltpu.CompilerParams(
            dimension_semantics=("parallel",)),
    )(flat_keys, addr_t, flat_bank)
    return out.reshape(*lead, *bank.shape[1:])


# ---------------------------------------------------------------------------
# Module mirrors.
# ---------------------------------------------------------------------------

def unsqueeze_expand(t, dim, times):
    if times == 0:
        return t
    t = jnp.expand_dims(t, dim)
    shape = list(t.shape)
    shape[dim] = times
    return jnp.broadcast_to(t, shape)


def reshape_in_time(t):
    return t.reshape((-1,) + t.shape[2:])


class InferredConv2D:
    """Per-example conv2d with its own (w, b); Pallas-backed."""

    def __init__(self, w, b, s=1, p=0, matmul_dtype=jnp.bfloat16, out_dtype=None):
        self.w, self.b, self.s, self.p = w, b, s, p
        self.matmul_dtype = matmul_dtype
        self.out_dtype = out_dtype

    def forward(self, x, s=None, p=None):
        s = self.s if s is None else s
        p = self.p if p is None else p
        return batch_conv_pallas(x, self.w, self.b, p=p, s=s,
                                 matmul_dtype=self.matmul_dtype,
                                 out_dtype=self.out_dtype)

    __call__ = forward


class HyperConvFilter2D:
    """Mirror of the PyTorch module: parameter banks + soft addressing."""
    # TODO(synk): torch Module bookkeeping (persist/preload/optim/summary) is
    # training/serialization infrastructure, not part of the forward pass.

    def __init__(self, w_bank, b_bank, address_space, matmul_dtype=jnp.bfloat16):
        self.w_bank = w_bank                    # (bank_params, Cout, Cin, KH, KW)
        self.b_bank = b_bank                    # (bank_params,)
        self.address_space = address_space      # (bank_params, address_size)
        self.address_size = address_space.shape[-1]
        self.matmul_dtype = jnp.dtype(matmul_dtype)
        # One-time low-precision copy of the filter bank: soft addressing reads
        # half the bank bytes and emits w directly in the conv matmul dtype
        # (no separate f32->bf16 HBM pass over the inferred filters per call).
        self.w_bank_mm = w_bank.astype(self.matmul_dtype)

    def forward(self, w_addr, b_addr, s, p, seq_size=0):
        assert w_addr.shape[-1] == self.address_size
        assert b_addr.shape[-1] == self.address_size
        w = soft_addressing_pallas(w_addr, self.address_space, self.w_bank_mm,
                                   out_dtype=self.matmul_dtype)
        b = soft_addressing_pallas(b_addr, self.address_space, self.b_bank,
                                   out_dtype=jnp.float32)
        if seq_size > 0:
            w = reshape_in_time(unsqueeze_expand(w, 1, seq_size))
            b = reshape_in_time(unsqueeze_expand(b, 1, seq_size))
        return InferredConv2D(w, b, s, p, matmul_dtype=self.matmul_dtype)

    __call__ = forward


# ---------------------------------------------------------------------------
# Pure-JAX references.
# ---------------------------------------------------------------------------

def _soft_addressing_ref(keys, address_space, bank):
    lead = keys.shape[:-1]
    flat_keys = keys.reshape(-1, keys.shape[-1]).astype(jnp.float32)
    sel = jax.nn.softmax(flat_keys @ address_space.astype(jnp.float32).T, axis=-1)
    out = sel @ bank.reshape(bank.shape[0], -1).astype(jnp.float32)
    return out.reshape(*lead, *bank.shape[1:])


def _batch_conv_ref(x, w, b, p=0, s=1):
    x = x.astype(jnp.float32)
    w = w.astype(jnp.float32)
    b = b.astype(jnp.float32)
    B, Cin, H, W = x.shape
    Cout, KH, KW = w.shape[1], w.shape[3], w.shape[4]
    o = lax.conv_general_dilated(
        x.reshape(1, B * Cin, H, W),
        w.reshape(B * Cout, Cin, KH, KW),
        window_strides=(s, s), padding=((p, p), (p, p)),
        dimension_numbers=("NCHW", "OIHW", "NCHW"),
        feature_group_count=B)
    o = o.reshape(B, Cout, o.shape[2], o.shape[3])
    return o + b[:, :, None, None]


if __name__ == "__main__":
    B, Cin, Cout, H, W, KH, KW = 2, 4, 8, 16, 16, 3, 3
    bank_params, address_size = 16, 32
    stride, pad = 1, 1

    key = jax.random.PRNGKey(0)
    kwb, kbb, kas, kwa, kba, kx = jax.random.split(key, 6)
    w_bank = jax.random.normal(kwb, (bank_params, Cout, Cin, KH, KW), jnp.float32) * 0.1
    b_bank = jax.random.uniform(kbb, (bank_params,), jnp.float32, -0.1, 0.1)
    address_space = jax.random.normal(kas, (bank_params, address_size), jnp.float32)
    w_addr = jax.random.normal(kwa, (B, address_size), jnp.float32)
    b_addr = jax.random.normal(kba, (B, Cout, address_size), jnp.float32)
    x = jax.random.normal(kx, (B, Cin, H, W), jnp.float32)

    hyper = HyperConvFilter2D(w_bank, b_bank, address_space)
    conv = hyper(w_addr, b_addr, s=stride, p=pad)            # -> InferredConv2D

    # 1) inferred filters/bias vs pure-JAX soft addressing (w path is bf16).
    w_ref = _soft_addressing_ref(w_addr, address_space, w_bank)
    b_ref = _soft_addressing_ref(b_addr, address_space, b_bank)
    assert conv.w.shape == w_ref.shape and conv.b.shape == b_ref.shape
    assert jnp.allclose(conv.w.astype(jnp.float32), w_ref, atol=6e-3, rtol=3e-2), \
        "w addressing mismatch"
    assert jnp.allclose(conv.b, b_ref, atol=1e-4, rtol=1e-4), "b addressing mismatch"

    # 2) per-example conv (in-kernel tap path) vs grouped-conv reference.
    out_bf16 = conv(x)                                       # default bf16 MXU path
    out_f32 = batch_conv_pallas(x, conv.w, conv.b, p=pad, s=stride,
                                matmul_dtype=jnp.float32)
    out_s2 = batch_conv_pallas(x, conv.w, conv.b, p=0, s=2,
                               matmul_dtype=jnp.float32)
    out_fb = batch_conv_pallas(x, conv.w, conv.b, p=pad, s=stride,
                               matmul_dtype=jnp.float32, force_path="im2col")
    out_bf16, out_f32, out_s2, out_fb = jax.block_until_ready(
        (out_bf16, out_f32, out_s2, out_fb))

    ref = _batch_conv_ref(x, conv.w, conv.b, p=pad, s=stride)
    ref_s2 = _batch_conv_ref(x, conv.w, conv.b, p=0, s=2)
    assert out_f32.shape == ref.shape, (out_f32.shape, ref.shape)
    assert out_s2.shape == ref_s2.shape, (out_s2.shape, ref_s2.shape)
    assert jnp.allclose(out_f32, ref, atol=2e-3, rtol=2e-3), "f32 conv mismatch"
    assert jnp.allclose(out_s2, ref_s2, atol=2e-3, rtol=2e-3), "stride-2 conv mismatch"
    assert jnp.allclose(out_fb, ref, atol=2e-3, rtol=2e-3), "im2col fallback mismatch"
    scale = float(jnp.max(jnp.abs(ref))) + 1e-6
    assert float(jnp.max(jnp.abs(out_bf16 - ref))) <= 3e-2 * scale, "bf16 conv mismatch"

    # 3) odd shapes: ragged Cout, non-128 widths, stride-2 phase decomposition.
    k2 = jax.random.split(jax.random.PRNGKey(1), 3)
    x2 = jax.random.normal(k2[0], (1, 3, 9, 11), jnp.float32)
    w2 = jax.random.normal(k2[1], (1, 5, 3, 3, 3), jnp.float32) * 0.2
    b2 = jax.random.normal(k2[2], (1, 5), jnp.float32) * 0.1
    for pp, ss in ((1, 1), (0, 2)):
        got = batch_conv_pallas(x2, w2, b2, p=pp, s=ss, matmul_dtype=jnp.float32)
        want = _batch_conv_ref(x2, w2, b2, p=pp, s=ss)
        assert got.shape == want.shape, (got.shape, want.shape)
        assert jnp.allclose(got, want, atol=2e-3, rtol=2e-3), \
            f"odd-shape conv mismatch p={pp} s={ss}"
        jax.block_until_ready(got)

    print("KERNEL_OK")
</pallas_src>

<mosaic_0001>
module attributes {stable_mosaic.version = 11 : i64} {
  func.func @_soft_addressing_kernel(%arg0: i32, %arg1: memref<2x32xf32, #tpu.memory_space<vmem>>, %arg2: memref<32x16xf32, #tpu.memory_space<vmem>>, %arg3: memref<16x288xbf16, #tpu.memory_space<vmem>>, %arg4: memref<2x288xbf16, #tpu.memory_space<vmem>>) attributes {dimension_semantics = [#tpu.dimension_semantics<parallel>], iteration_bounds = array<i64: 1>, scalar_prefetch = 0 : i64, scratch_operands = 0 : i64, tpu.core_type = #tpu.core_type<tc>, window_params = [{pipeline_mode = #tpu.pipeline_mode<synchronous>, transform_indices = @transform_0, window_bounds = array<i64: 2, 32>}, {pipeline_mode = #tpu.pipeline_mode<synchronous>, transform_indices = @transform_1, window_bounds = array<i64: 32, 16>}, {transform_indices = @transform_2, window_bounds = array<i64: 16, 288>}, {transform_indices = @transform_3, window_bounds = array<i64: 2, 288>}]} {
    %c0 = arith.constant 0 : index
    %c0_0 = arith.constant 0 : index
    %0 = vector.load %arg1[%c0, %c0_0] : memref<2x32xf32, #tpu.memory_space<vmem>>, vector<2x32xf32>
    %c0_1 = arith.constant 0 : index
    %c0_2 = arith.constant 0 : index
    %1 = vector.load %arg2[%c0_1, %c0_2] : memref<32x16xf32, #tpu.memory_space<vmem>>, vector<32x16xf32>
    %cst = arith.constant dense<0.000000e+00> : vector<2x16xf32>
    %2 = tpu.matmul %0, %1, %cst {dimension_numbers = #tpu.dot_dimension_numbers<[1], [0], [0], [1], [0, 0, 1, 1], [], []>} : vector<2x32xf32>, vector<32x16xf32>, vector<2x16xf32> -> vector<2x16xf32>
    %cst_3 = arith.constant dense<0xFF800000> : vector<2xf32>
    %3 = vector.multi_reduction <maximumf>, %2, %cst_3 [1] : vector<2x16xf32> to vector<2xf32>
    %4 = vector.shape_cast %3 : vector<2xf32> to vector<2x1xf32>
    %5 = vector.broadcast %4 : vector<2x1xf32> to vector<2x16xf32>
    %6 = arith.subf %2, %5 : vector<2x16xf32>
    %7 = math.exp %6 : vector<2x16xf32>
    %cst_4 = arith.constant dense<0.000000e+00> : vector<2xf32>
    %8 = vector.multi_reduction <add>, %7, %cst_4 [1] : vector<2x16xf32> to vector<2xf32>
    %9 = vector.shape_cast %8 : vector<2xf32> to vector<2x1xf32>
    %10 = vector.broadcast %9 : vector<2x1xf32> to vector<2x16xf32>
    %11 = arith.divf %7, %10 : vector<2x16xf32>
    %c0_5 = arith.constant 0 : index
    %c0_6 = arith.constant 0 : index
    %12 = vector.load %arg3[%c0_5, %c0_6] : memref<16x288xbf16, #tpu.memory_space<vmem>>, vector<16x288xbf16>
    %13 = arith.truncf %11 : vector<2x16xf32> to vector<2x16xbf16>
    %cst_7 = arith.constant dense<0.000000e+00> : vector<2x288xf32>
    %14 = tpu.matmul %13, %12, %cst_7 {dimension_numbers = #tpu.dot_dimension_numbers<[1], [0], [0], [1], [0, 0, 1, 1], [], []>} : vector<2x16xbf16>, vector<16x288xbf16>, vector<2x288xf32> -> vector<2x288xf32>
    %15 = arith.truncf %14 : vector<2x288xf32> to vector<2x288xbf16>
    %c0_8 = arith.constant 0 : index
    %c0_9 = arith.constant 0 : index
    %16 = vector.load %arg4[%c0_8, %c0_9] : memref<2x288xbf16, #tpu.memory_space<vmem>>, vector<2x288xbf16>
    tpu.vector_store %arg4[%c0_8, %c0_9], %15 {strides = array<i32>} : memref<2x288xbf16, #tpu.memory_space<vmem>>, vector<2x288xbf16>,
    return
  }
  func.func @transform_0(%arg0: i32) -> (i32, i32) {
    %c0_i32 = arith.constant 0 : i32
    %c0_i32_0 = arith.constant 0 : i32
    %c0_i32_1 = arith.constant 0 : i32
    return %c0_i32, %c0_i32_0 : i32, i32
  }
  func.func @transform_1(%arg0: i32) -> (i32, i32) {
    %c0_i32 = arith.constant 0 : i32
    %c0_i32_0 = arith.constant 0 : i32
    %c0_i32_1 = arith.constant 0 : i32
    return %c0_i32, %c0_i32_0 : i32, i32
  }
  func.func @transform_2(%arg0: i32) -> (i32, i32) {
    %c0_i32 = arith.constant 0 : i32
    %c0_i32_0 = arith.constant 0 : i32
    return %c0_i32, %arg0 : i32, i32
  }
  func.func @transform_3(%arg0: i32) -> (i32, i32) {
    %c0_i32 = arith.constant 0 : i32
    %c0_i32_0 = arith.constant 0 : i32
    return %c0_i32, %arg0 : i32, i32
  }
}

</mosaic_0001>

<llo_original>
// kernel: tpu_custom_call.1
$region0: #{tpu_custom_call.1}
  #allocation0 [shape = 'u32[]', space=smem, size = 0x4, offset = 0x4, fixed_abs, tag = 'smem constant byte address 0x4 - core index']
  #allocation1 [shape = 'u32[144,128]{1,0:T(1,128)}', space=vmem, size = 0x12000, scoped, tag = 'internal scratch']
  %s0 = inlined_call_operand.vmem [shape: f32[2,32], index: 0, kind: input, shape index: {}]
  %s1 = inlined_call_operand.vmem [shape: f32[32,16], index: 1, kind: input, shape index: {}]
  %s2 = inlined_call_operand.vmem [shape: bf16[16,288], index: 2, kind: input, shape index: {}]
  %s3 = inlined_call_operand.hbm [shape: bf16[2,288], index: 3, kind: output, shape index: {}]
  %s4 = sld [smem:[#allocation0]]
  $region22: #{tpu_custom_call.1} parent=0
    _
  %s6 = ssub.s32 1, %s4
  %s7 = scalar_select 0, %s6, %s4
  $region1: #{tpu_custom_call.1} parent=0
    #allocation2 [shape = 'u8[1536]{0}', space=vmem, size = 0x800, scoped, tag = 'output window, operand 0, single buffered']
    #allocation3 [shape = 's32[1]{0}', space=sflag, size = 0x4, scoped, tag = 'scoped memory for tpu_custom_call.1']
    %8 = vsyncpa [#allocation3], 0
    // Predicated region
    $region2: #{tpu_custom_call.1} parent=1 // pred_check
      _
    $region3: #{tpu_custom_call.1} parent=1 // pred_check_branch
      %10 = sbr.rel (0) target = $region5
    $region4: #{tpu_custom_call.1} parent=1 // pred_region
      _
    $region5: #{tpu_custom_call.1} parent=1 // pred_fallthru
      _
    // Predicated region
    $region6: #{tpu_custom_call.1} parent=1 // pred_check
      _
    $region7: #{tpu_custom_call.1} parent=1 // pred_check_branch
      %12 = sbr.rel (0) target = $region9
    $region8: #{tpu_custom_call.1} parent=1 // pred_region
      _
    $region9: #{tpu_custom_call.1} parent=1 // pred_fallthru
      _
    // Predicated region
    $region10: #{tpu_custom_call.1} parent=1 // pred_check
      _
    $region11: #{tpu_custom_call.1} parent=1 // pred_check_branch
      %14 = sbr.rel (0) target = $region13
    $region12: #{tpu_custom_call.1} parent=1 // pred_region
      _
    $region13: #{tpu_custom_call.1} parent=1 // pred_fallthru
      _
    %v16 = vld [vmem:[%s0] sm:$0x3]
    %v17 = vld [vmem:[%s1] sm:$0xff]
    %v18 = vld [vmem:[%s1 + $0x8] sm:$0xff]
    %v19 = vld [vmem:[%s1 + $0x10] sm:$0xff]
    %v20 = vld [vmem:[%s1 + $0x18] sm:$0xff]
    %vm21 = vcmask 261120
    %v23 = vsel %vm21, %v16, 0
    %25 = vmatprep.subr.mxu0 0.0
    %26 = vmatpush1.msra.mxu0 0.0
    %27 = vmatprep.subr.mxu0 0.0
    %28 = vmatpush1.msra.mxu0 0.0
    %29 = vmatprep.subr.mxu0 0.0
    %30 = vmatpush1.msra.mxu0 0.0
    %31 = vmatprep.subr.mxu0 0.0
    %32 = vmatpush1.msra.mxu0 0.0
    %33 = vmatprep.subr.mxu0 0.0
    %34 = vmatpush1.msra.mxu0 0.0
    %35 = vmatprep.subr.mxu0 0.0
    %36 = vmatpush1.msra.mxu0 0.0
    %37 = vmatprep.subr.mxu0 0.0
    %38 = vmatpush1.msra.mxu0 0.0
    %39 = vmatprep.subr.mxu0 0.0
    %40 = vmatpush1.msra.mxu0 0.0
    %41 = vmatprep.subr.mxu0 0.0
    %42 = vmatpush1.msra.mxu0 0.0
    %43 = vmatprep.subr.mxu0 0.0
    %44 = vmatpush1.msra.mxu0 0.0
    %45 = vmatprep.subr.mxu0 0.0
    %46 = vmatpush1.msra.mxu0 0.0
    %47 = vmatprep.subr.mxu0 0.0
    %48 = vmatpush1.msra.mxu0 0.0
    %49 = vmatprep.subr.mxu0 0.0
    %50 = vmatpush1.msra.mxu0 %v20
    %51 = vmatprep.subr.mxu0 0.0
    %52 = vmatpush1.msra.mxu0 %v19
    %53 = vmatprep.subr.mxu0 0.0
    %54 = vmatpush1.msra.mxu0 %v18
    %55 = vmatprep.subr.mxu0 0.0
    %56 = vmatpush1.msra.mxu0 %v17
    %57 = vmatprep.subr.mxu0 0.0
    %58 = vmatpush2.msra.mxu0 0.0
    %59 = vmatprep.subr.mxu0 0.0
    %60 = vmatpush2.msra.mxu0 0.0
    %61 = vmatprep.subr.mxu0 0.0
    %62 = vmatpush2.msra.mxu0 0.0
    %63 = vmatprep.subr.mxu0 0.0
    %64 = vmatpush2.msra.mxu0 0.0
    %65 = vmatprep.subr.mxu0 0.0
    %66 = vmatpush2.msra.mxu0 0.0
    %67 = vmatprep.subr.mxu0 0.0
    %68 = vmatpush2.msra.mxu0 0.0
    %69 = vmatprep.subr.mxu0 0.0
    %70 = vmatpush2.msra.mxu0 0.0
    %71 = vmatprep.subr.mxu0 0.0
    %72 = vmatpush2.msra.mxu0 0.0
    %73 = vmatprep.subr.mxu0 0.0
    %74 = vmatpush2.msra.mxu0 0.0
    %75 = vmatprep.subr.mxu0 0.0
    %76 = vmatpush2.msra.mxu0 0.0
    %77 = vmatprep.subr.mxu0 0.0
    %78 = vmatpush2.msra.mxu0 0.0
    %79 = vmatprep.subr.mxu0 0.0
    %80 = vmatpush2.msra.mxu0 0.0
    %81 = vmatprep.subr.mxu0 0.0
    %82 = vmatpush2.msra.mxu0 0.0
    %83 = vmatprep.subr.mxu0 0.0
    %84 = vmatpush2.msra.mxu0 0.0
    %85 = vmatprep.subr.mxu0 0.0
    %86 = vmatpush2.msra.mxu0 0.0
    %87 = vmatprep.subr.mxu0 0.0
    %88 = vmatpush2.msra.mxu0 0.0
    %89 = vmatprep.mubr.f32.mxu0 0.0
    %90 = vmatmul.mubr.f32.gmra.mxu0 %v23
    %v91 = vpop.f32.mrf.mxu0
    %v92 = vadd.f32 0.0, %v91
    %v93 = vpop.f32.mrf.mxu0
    %94 = vdwg.mxu0
    %vm95 = vcmask 123904
    %v96 = vsel %vm95, %v92, -inf
    %97 = vmax.xlane.f32.xlu0 %v96
    %v98 = vpop.xlane.xlu0 %97
    %v99 = vsub.f32 %v92, %v98
    %v100 = vmul.f32 %v99, 1.442695
    %v101 = vpow.pop %v100
    %v102 = vsel %vm95, %v101, 0.0
    %103 = vadd.xlane.f32.xlu0 %v102
    %v104 = vpop.xlane.xlu0 %103
    %v105 = vrcp.pop %v104
    %v106 = vmul.f32 %v101, %v105
    %v107 = vld [vmem:[%s2] sm:$0xff]
    %v108 = vld [vmem:[%s2 + $0x8] sm:$0xf]
    %v109 = vld [vmem:[%s2 + $0xc] sm:$0xff]
    %v110 = vld [vmem:[%s2 + $0x14] sm:$0xf]
    %v111 = vpack.c.bf16 %v106, %v106
    %v116 = vunpack.c.l.b16 %v107
    %v117 = vunpack.c.h.b16 %v107
    %v118 = vunpack.c.l.b16 %v108
    %v119 = vunpack.c.l.b16 %v109
    %v120 = vunpack.c.h.b16 %v109
    %v121 = vunpack.c.l.b16 %v110
    %v122 = vpack.c.b16 %v119, %v116
    %v123 = vpack.c.b16 %v120, %v117
    %v124 = vpack.c.b16 %v121, %v118
    %vm128 = vcmask 130048
    %v130 = vsel %vm128, %v111, 0
    %132 = vmatprep.subr.bf16.mxu0 0
    %133 = vmatpush1.bf16.msra.mxu0 0
    %134 = vmatprep.subr.bf16.mxu0 0
    %135 = vmatpush1.bf16.msra.mxu0 0
    %136 = vmatprep.subr.bf16.mxu0 0
    %137 = vmatpush1.bf16.msra.mxu0 0
    %138 = vmatprep.subr.bf16.mxu0 0
    %139 = vmatpush1.bf16.msra.mxu0 0
    %140 = vmatprep.subr.bf16.mxu0 0
    %141 = vmatpush1.bf16.msra.mxu0 0
    %142 = vmatprep.subr.bf16.mxu0 0
    %143 = vmatpush1.bf16.msra.mxu0 0
    %144 = vmatprep.subr.bf16.mxu0 0
    %145 = vmatpush1.bf16.msra.mxu0 0
    %146 = vmatprep.subr.bf16.mxu0 %v123
    %147 = vmatpush1.bf16.msra.mxu0 %v122
    %148 = vmatprep.subr.bf16.mxu0 0
    %149 = vmatpush2.bf16.msra.mxu0 0
    %150 = vmatprep.subr.bf16.mxu0 0
    %151 = vmatpush2.bf16.msra.mxu0 0
    %152 = vmatprep.subr.bf16.mxu0 0
    %153 = vmatpush2.bf16.msra.mxu0 0
    %154 = vmatprep.subr.bf16.mxu0 0
    %155 = vmatpush2.bf16.msra.mxu0 0
    %156 = vmatprep.subr.bf16.mxu0 0
    %157 = vmatpush2.bf16.msra.mxu0 0
    %158 = vmatprep.subr.bf16.mxu0 0
    %159 = vmatpush2.bf16.msra.mxu0 0
    %160 = vmatprep.subr.bf16.mxu0 0
    %161 = vmatpush2.bf16.msra.mxu0 0
    %162 = vmatprep.subr.bf16.mxu0 0
    %163 = vmatpush2.bf16.msra.mxu0 0
    %164 = vmatprep.mubr.bf16.mxu0 0
    %165 = vmatmul.mubr.bf16.gmra.mxu0 %v130
    %v166 = vpop.f32.mrf.mxu0
    %v167 = vadd.f32 0.0, %v166
    %v168 = vpop.f32.mrf.mxu0
    %v169 = vadd.f32 0.0, %v168
    %v170 = vpop.f32.mrf.mxu0
    %v171 = vpop.f32.mrf.mxu0
    %172 = vdwg.mxu0
    %173 = vmatprep.subr.bf16.mxu0 0
    %174 = vmatpush1.bf16.msra.mxu0 0
    %175 = vmatprep.subr.bf16.mxu0 0
    %176 = vmatpush1.bf16.msra.mxu0 0
    %177 = vmatprep.subr.bf16.mxu0 0
    %178 = vmatpush1.bf16.msra.mxu0 0
    %179 = vmatprep.subr.bf16.mxu0 0
    %180 = vmatpush1.bf16.msra.mxu0 0
    %181 = vmatprep.subr.bf16.mxu0 0
    %182 = vmatpush1.bf16.msra.mxu0 0
    %183 = vmatprep.subr.bf16.mxu0 0
    %184 = vmatpush1.bf16.msra.mxu0 0
    %185 = vmatprep.subr.bf16.mxu0 0
    %186 = vmatpush1.bf16.msra.mxu0 0
    %187 = vmatprep.subr.bf16.mxu0 0
    %188 = vmatpush1.bf16.msra.mxu0 %v124
    %189 = vmatprep.subr.bf16.mxu0 0
    %190 = vmatpush2.bf16.msra.mxu0 0
    %191 = vmatprep.subr.bf16.mxu0 0
    %192 = vmatpush2.bf16.msra.mxu0 0
    %193 = vmatprep.subr.bf16.mxu0 0
    %194 = vmatpush2.bf16.msra.mxu0 0
    %195 = vmatprep.subr.bf16.mxu0 0
    %196 = vmatpush2.bf16.msra.mxu0 0
    %197 = vmatprep.subr.bf16.mxu0 0
    %198 = vmatpush2.bf16.msra.mxu0 0
    %199 = vmatprep.subr.bf16.mxu0 0
    %200 = vmatpush2.bf16.msra.mxu0 0
    %201 = vmatprep.subr.bf16.mxu0 0
    %202 = vmatpush2.bf16.msra.mxu0 0
    %203 = vmatprep.subr.bf16.mxu0 0
    %204 = vmatpush2.bf16.msra.mxu0 0
    %205 = vmatprep.mubr.bf16.mxu0 0
    %206 = vmatmul.mubr.bf16.gmra.mxu0 %v130
    %v207 = vpop.f32.mrf.mxu0
    %v208 = vadd.f32 0.0, %v207
    %v209 = vpop.f32.mrf.mxu0
    %v210 = vpop.f32.mrf.mxu0
    %v211 = vpop.f32.mrf.mxu0
    %212 = vdwg.mxu0
    %v213 = vpack.c.bf16 %v167, %v167
    %v214 = vpack.c.bf16 %v169, %v169
    %v215 = vpack.c.bf16 %v208, %v208
    %v219 = vcombine.low %v213, %v214
    %v221 = vunpack.c.l.s4 1966171168
    %v222 = vunpack.c.0.s8 %v221
    %v223 = vlaneseq
    %v224 = vshrl.u32 %v223, 7
    %v225 = vsub.s32 %v222, %v224
    %v226 = vrot.slane %v219, %v225
    %v228 = vunpack.c.l.s4 1966171168
    %v229 = vunpack.c.0.s8 %v228
    %v230 = vlaneseq
    %v231 = vshrl.u32 %v230, 7
    %v232 = vsub.s32 %v229, %v231
    %v233 = vrot.slane %v215, %v232
    %v234 = vcombine.low %v226, %v233
    %v236 = vunpack.c.l.s4 1966171168
    %v237 = vunpack.c.0.s8 %v236
    %v238 = vlaneseq
    %v239 = vshrl.u32 %v238, 7
    %v240 = vsub.s32 %v237, %v239
    %v241 = vrot.slane %v234, %v240
    %vm243 = vcmask 1040384
    %vm244 = vcmask 1041409
    %vm245 = vmor %vm244, %vm243
    %vm246 = vcmask 256002
    %vm247 = vmor %vm246, %vm245
    %248 = vst.msk [vmem:[#allocation2] sm:$0x7] %vm247, %v241
    // Predicated region
    $region14: #{tpu_custom_call.1} parent=1 // pred_check
      _
    $region15: #{tpu_custom_call.1} parent=1 // pred_check_branch
      %250 = sbr.rel (0) target = $region17
    $region16: #{tpu_custom_call.1} parent=1 // pred_region
      %s252 = ssub.s32 48, 48
      %253 = vsyncadd [#allocation3], %s252
      %s255 = sshll.u32 [#allocation2], 4
      %s256 = int_to_ptr.vmem [resolvable:$true] %s255
      %258 = dma.vmem_to_hbm [thread:$0]  %s256, 48, %s3, [#allocation3]
    $region17: #{tpu_custom_call.1} parent=1 // pred_fallthru
      _
    // Predicated region
    $region18: #{tpu_custom_call.1} parent=1 // pred_check
      _
    $region19: #{tpu_custom_call.1} parent=1 // pred_check_branch
      %260 = sbr.rel (0) target = $region21
    $region20: #{tpu_custom_call.1} parent=1 // pred_region
      %261 = dma.done [#allocation3], 48
    $region21: #{tpu_custom_call.1} parent=1 // pred_fallthru
      _
    %262 = vsyncpa [#allocation3], 1

</llo_original>
